<compile_context>
chip_gen: v5e
topology: v5e:2x2
jax: 0.10.0
libtpu: 0.0.40
codegen_flags: <defaults>
</compile_context>

<pallas_src>
import functools

import jax
import jax.numpy as jnp
from jax.experimental import pallas as pl
from jax.experimental.pallas import tpu as pltpu


def _cond_conv3x3_swish_kernel(x_ref, w_ref, fb_ref, o_ref, col_ref, *,
                               H, W, HW, n_img, Cp, C_out, N):
    """One grid step = `n_img` images folded onto the lane axis.

    x_ref   : (n_img, Cp, HW)    input, NCHW with spatial flattened; Cp = C_in padded
                                 to the sublane packing of the matmul dtype
    w_ref   : (C_out, 9*Cp)      conv weight, K ordered tap-major then input channel
    fb_ref  : (n_img, C_out, 1)  fused bias: conv bias + time projection (f32)
    o_ref   : (n_img, C_out, HW) output, NCHW-flat (lane-dense stores)
    col_ref : (9*Cp, N)          im2col scratch, N = n_img * HW
    """
    cdt = x_ref.dtype

    # Fold the images of this block onto the lane axis (aligned lane concat), then
    # promote to f32 so all elementwise work (rolls / masks) runs in f32.
    x_full = jnp.concatenate([x_ref[b] for b in range(n_img)], axis=1)
    x_full = x_full.astype(jnp.float32)                        # (Cp, N)

    # Boundary masks built in-kernel from a lane iota (no idx/mask input stream).
    lane = jax.lax.broadcasted_iota(jnp.int32, (1, N), 1)
    if (HW & (HW - 1)) == 0 and (W & (W - 1)) == 0:            # ScoreSDE images: powers of 2
        p = lane & (HW - 1)                                    # position within its image
        c = lane & (W - 1)                                     # column within its row
    else:                                                      # general fallback
        p = jax.lax.rem(lane, HW)
        c = jax.lax.rem(lane, W)
    row_ok = ((p >= W).astype(jnp.float32), None, (p < (H - 1) * W).astype(jnp.float32))
    col_ok = ((c >= 1).astype(jnp.float32), None, (c <= W - 2).astype(jnp.float32))

    # im2col: 9 rolled + masked copies stacked on the K (sublane) axis of the scratch.
    # Roll wrap-around (incl. cross-image lanes from the batch fold) hits exactly the
    # lanes zeroed by the row/col masks, so the fold stays correct.
    for dy in range(3):
        for dx in range(3):
            t = dy * 3 + dx
            off = (dy - 1) * W + (dx - 1)
            if off == 0:
                slab = x_full                                  # center tap: no shift, no mask
            else:
                slab = pltpu.roll(x_full, shift=(-off) % N, axis=1)
                m = row_ok[dy]
                if col_ok[dx] is not None:
                    m = col_ok[dx] if m is None else m * col_ok[dx]
                slab = slab * m                                # single vmul per tap
            col_ref[pl.ds(t * Cp, Cp), :] = slab.astype(cdt)   # aligned sublane-band store

    # Single im2col matmul on the MXU: (C_out, 9*Cp) x (9*Cp, N) -> f32 (C_out, N).
    acc = jnp.dot(w_ref[...], col_ref[...], preferred_element_type=jnp.float32)

    # f32 epilogue per image: fused bias (conv bias + time projection) + Swish.
    for b in range(n_img):
        y = acc[:, b * HW:(b + 1) * HW] + fb_ref[b]            # (C_out, HW) + (C_out, 1)
        y = y * jax.nn.sigmoid(y)
        o_ref[b] = y.astype(o_ref.dtype)                       # lane-dense, unmasked store


def module_with_activation(x_nchw, t_emb, w, b, wt, bt, *,
                           compute_dtype=jnp.bfloat16, images_per_step=None):
    """PyTorch-style entry point: x is NCHW (B, C_in, H, W); returns NCHW (B, C_out, H, W).

    w : (3, 3, C_in, C_out) conv weight (HWIO), b : (C_out,) conv bias
    wt: (T, C_out) time-projection weight,      bt: (C_out,) time-projection bias
    compute_dtype: matmul-operand dtype (bf16 = native fast MXU path on v6e/v7x and
                   half the DMA bytes); accumulation and the epilogue stay in f32.
    """
    B, C_in, H, W = x_nchw.shape
    C_out = w.shape[-1]
    HW = H * W

    if images_per_step is None:
        images_per_step = B            # small-image regime: fold the whole batch into one step
    assert B % images_per_step == 0
    grid_b = B // images_per_step
    N = images_per_step * HW

    # Pad C_in up to the sublane packing of compute_dtype so every im2col band lands on an
    # aligned sublane offset (zero input rows x zero weight columns contribute nothing).
    pack = max(8, 32 // jnp.dtype(compute_dtype).itemsize)     # 8 for f32, 16 for bf16
    Cp = -(-C_in // pack) * pack

    x_flat = x_nchw.reshape(B, C_in, HW)                       # free metadata reshape
    w_t = jnp.transpose(w, (3, 0, 1, 2)).reshape(C_out, 9, C_in)   # w_t[o, t, c] = w[dy,dx,c,o]
    if Cp != C_in:
        x_flat = jnp.pad(x_flat, ((0, 0), (0, Cp - C_in), (0, 0)))
        w_t = jnp.pad(w_t, ((0, 0), (0, 0), (0, Cp - C_in)))
    x_flat = x_flat.astype(compute_dtype)
    w2 = w_t.reshape(C_out, 9 * Cp).astype(compute_dtype)

    # Hoist the time projection and both biases into one (B, C_out) f32 bias.
    fused_bias = (t_emb.astype(jnp.float32) @ wt.astype(jnp.float32)
                  + bt.astype(jnp.float32) + b.astype(jnp.float32)).reshape(B, C_out, 1)

    kernel = functools.partial(_cond_conv3x3_swish_kernel,
                               H=H, W=W, HW=HW, n_img=images_per_step,
                               Cp=Cp, C_out=C_out, N=N)

    # TODO(synk): for real ScoreSDE resolutions (large HW / large C) add a row-strip grid
    # axis with a 1-row halo plus a C_out tile axis, and set vmem_limit_bytes so per-step
    # blocks fit v7x's 64 MiB VMEM with >= 2 pipelined parallel steps per TensorCore.
    out_flat = pl.pallas_call(
        kernel,
        out_shape=jax.ShapeDtypeStruct((B, C_out, HW), x_nchw.dtype),
        grid=(grid_b,),
        in_specs=[
            pl.BlockSpec((images_per_step, Cp, HW), lambda g: (g, 0, 0)),
            pl.BlockSpec((C_out, 9 * Cp), lambda g: (0, 0)),           # constant-index block
            pl.BlockSpec((images_per_step, C_out, 1), lambda g: (g, 0, 0)),
        ],
        out_specs=pl.BlockSpec((images_per_step, C_out, HW), lambda g: (g, 0, 0)),
        scratch_shapes=[pltpu.VMEM((9 * Cp, N), compute_dtype)],
        compiler_params=pltpu.CompilerParams(dimension_semantics=("parallel",)),
    )(x_flat, w2, fused_bias)

    return out_flat.reshape(B, C_out, H, W)


def _reference(x_nchw, t_emb, w, b, wt, bt):
    """Pure-JAX reference: conv3x3 (SAME) + conv bias + time bias + Swish."""
    y = jax.lax.conv_general_dilated(
        x_nchw.astype(jnp.float32), w.astype(jnp.float32),
        window_strides=(1, 1), padding="SAME",
        dimension_numbers=("NCHW", "HWIO", "NCHW"),
        precision=jax.lax.Precision.HIGHEST)
    y = y + b.reshape(1, -1, 1, 1)
    t_bias = t_emb.astype(jnp.float32) @ wt.astype(jnp.float32) + bt
    y = y + t_bias[:, :, None, None]
    return y * jax.nn.sigmoid(y)


if __name__ == "__main__":
    # Small deterministic setup consistent with the module's forward signature.
    B, C_in, H, W = 2, 4, 16, 16
    C_out, T = 8, 32

    key = jax.random.PRNGKey(0)
    kx, kt, kw, kb, kwt, kbt = jax.random.split(key, 6)

    x = jax.random.normal(kx, (B, C_in, H, W), dtype=jnp.float32)          # NCHW input
    t_emb = jax.random.normal(kt, (B, T), dtype=jnp.float32)               # time embedding

    # Deterministic "parameter init" (synthetic, not a checkpoint load).
    w = jax.random.normal(kw, (3, 3, C_in, C_out), dtype=jnp.float32) * (1.0 / (3 * 3 * C_in) ** 0.5)
    b = jax.random.normal(kb, (C_out,), dtype=jnp.float32) * 0.01
    wt = jax.random.normal(kwt, (T, C_out), dtype=jnp.float32) * (1.0 / T ** 0.5)
    bt = jax.random.normal(kbt, (C_out,), dtype=jnp.float32) * 0.01

    out = jax.jit(module_with_activation)(x, t_emb, w, b, wt, bt)
    out = jax.block_until_ready(out)

    # Tight check: reference with operands pre-rounded to the kernel's bf16 matmul dtype
    # (both sides then accumulate in f32, so they agree to ~1e-5).
    xq = x.astype(jnp.bfloat16).astype(jnp.float32)
    wq = w.astype(jnp.bfloat16).astype(jnp.float32)
    ref_q = _reference(xq, t_emb, wq, b, wt, bt)
    # Loose sanity check against the full-f32 module semantics (bf16 operand rounding only).
    ref_f = _reference(x, t_emb, w, b, wt, bt)

    assert out.shape == (B, C_out, H, W), out.shape
    assert jnp.allclose(out, ref_q, atol=2e-3, rtol=2e-3), float(jnp.max(jnp.abs(out - ref_q)))
    assert jnp.allclose(out, ref_f, atol=1e-1, rtol=1e-1), float(jnp.max(jnp.abs(out - ref_f)))

    print("KERNEL_OK")
</pallas_src>

<mosaic_0001>
module attributes {stable_mosaic.version = 11 : i64} {
  func.func @_cond_conv3x3_swish_kernel(%arg0: i32, %arg1: memref<2x16x256xbf16, #tpu.memory_space<vmem>>, %arg2: memref<8x144xbf16, #tpu.memory_space<vmem>>, %arg3: memref<2x8x1xf32, #tpu.memory_space<vmem>>, %arg4: memref<2x8x256xf32, #tpu.memory_space<vmem>>, %arg5: memref<144x512xbf16, #tpu.memory_space<vmem>>) attributes {dimension_semantics = [#tpu.dimension_semantics<parallel>], iteration_bounds = array<i64: 1>, scalar_prefetch = 0 : i64, scratch_operands = 1 : i64, tpu.core_type = #tpu.core_type<tc>, window_params = [{transform_indices = @transform_0, window_bounds = array<i64: 2, 16, 256>}, {pipeline_mode = #tpu.pipeline_mode<synchronous>, transform_indices = @transform_1, window_bounds = array<i64: 8, 144>}, {transform_indices = @transform_2, window_bounds = array<i64: 2, 8, 1>}, {transform_indices = @transform_3, window_bounds = array<i64: 2, 8, 256>}]} {
    %c0 = arith.constant 0 : index
    %c0_0 = arith.constant 0 : index
    %c0_1 = arith.constant 0 : index
    %0 = vector.load %arg1[%c0, %c0_0, %c0_1] : memref<2x16x256xbf16, #tpu.memory_space<vmem>>, vector<1x16x256xbf16>
    %1 = vector.shape_cast %0 : vector<1x16x256xbf16> to vector<16x256xbf16>
    %c1 = arith.constant 1 : index
    %c0_2 = arith.constant 0 : index
    %c0_3 = arith.constant 0 : index
    %2 = vector.load %arg1[%c1, %c0_2, %c0_3] : memref<2x16x256xbf16, #tpu.memory_space<vmem>>, vector<1x16x256xbf16>
    %3 = vector.shape_cast %2 : vector<1x16x256xbf16> to vector<16x256xbf16>
    %4 = tpu.concatenate %1, %3 in 1 : vector<16x256xbf16>, vector<16x256xbf16> -> vector<16x512xbf16>
    %5 = arith.extf %4 : vector<16x512xbf16> to vector<16x512xf32>
    %6 = tpu.iota {dimensions = array<i32: 1>} : vector<1x512xi32>
    %c255_i32 = arith.constant 255 : i32
    %7 = vector.broadcast %c255_i32 : i32 to vector<1x512xi32>
    %8 = arith.andi %6, %7 : vector<1x512xi32>
    %c15_i32 = arith.constant 15 : i32
    %9 = vector.broadcast %c15_i32 : i32 to vector<1x512xi32>
    %10 = arith.andi %6, %9 : vector<1x512xi32>
    %c16_i32 = arith.constant 16 : i32
    %11 = vector.broadcast %c16_i32 : i32 to vector<1x512xi32>
    %12 = arith.cmpi sge, %8, %11 : vector<1x512xi32>
    %13 = arith.extui %12 : vector<1x512xi1> to vector<1x512xi32>
    %14 = arith.sitofp %13 : vector<1x512xi32> to vector<1x512xf32>
    %c240_i32 = arith.constant 240 : i32
    %15 = vector.broadcast %c240_i32 : i32 to vector<1x512xi32>
    %16 = arith.cmpi slt, %8, %15 : vector<1x512xi32>
    %17 = arith.extui %16 : vector<1x512xi1> to vector<1x512xi32>
    %18 = arith.sitofp %17 : vector<1x512xi32> to vector<1x512xf32>
    %c1_i32 = arith.constant 1 : i32
    %19 = vector.broadcast %c1_i32 : i32 to vector<1x512xi32>
    %20 = arith.cmpi sge, %10, %19 : vector<1x512xi32>
    %21 = arith.extui %20 : vector<1x512xi1> to vector<1x512xi32>
    %22 = arith.sitofp %21 : vector<1x512xi32> to vector<1x512xf32>
    %c14_i32 = arith.constant 14 : i32
    %23 = vector.broadcast %c14_i32 : i32 to vector<1x512xi32>
    %24 = arith.cmpi sle, %10, %23 : vector<1x512xi32>
    %25 = arith.extui %24 : vector<1x512xi1> to vector<1x512xi32>
    %26 = arith.sitofp %25 : vector<1x512xi32> to vector<1x512xf32>
    %c17_i32 = arith.constant 17 : i32
    %27 = tpu.dynamic_rotate %5 by %c17_i32 dim 1 : vector<16x512xf32>, i32 -> vector<16x512xf32>
    %28 = arith.mulf %14, %22 : vector<1x512xf32>
    %29 = vector.broadcast %28 : vector<1x512xf32> to vector<16x512xf32>
    %30 = arith.mulf %27, %29 : vector<16x512xf32>
    %31 = arith.truncf %30 : vector<16x512xf32> to vector<16x512xbf16>
    %c0_4 = arith.constant 0 : index
    %c0_5 = arith.constant 0 : index
    %32 = vector.load %arg5[%c0_4, %c0_5] : memref<144x512xbf16, #tpu.memory_space<vmem>>, vector<16x512xbf16>
    tpu.vector_store %arg5[%c0_4, %c0_5], %31 {strides = array<i32>} : memref<144x512xbf16, #tpu.memory_space<vmem>>, vector<16x512xbf16>,
    %c16_i32_6 = arith.constant 16 : i32
    %33 = tpu.dynamic_rotate %5 by %c16_i32_6 dim 1 : vector<16x512xf32>, i32 -> vector<16x512xf32>
    %34 = vector.broadcast %14 : vector<1x512xf32> to vector<16x512xf32>
    %35 = arith.mulf %33, %34 : vector<16x512xf32>
    %36 = arith.truncf %35 : vector<16x512xf32> to vector<16x512xbf16>
    %c16 = arith.constant 16 : index
    %c0_7 = arith.constant 0 : index
    %37 = vector.load %arg5[%c16, %c0_7] : memref<144x512xbf16, #tpu.memory_space<vmem>>, vector<16x512xbf16>
    tpu.vector_store %arg5[%c16, %c0_7], %36 {strides = array<i32>} : memref<144x512xbf16, #tpu.memory_space<vmem>>, vector<16x512xbf16>,
    %c15_i32_8 = arith.constant 15 : i32
    %38 = tpu.dynamic_rotate %5 by %c15_i32_8 dim 1 : vector<16x512xf32>, i32 -> vector<16x512xf32>
    %39 = arith.mulf %14, %26 : vector<1x512xf32>
    %40 = vector.broadcast %39 : vector<1x512xf32> to vector<16x512xf32>
    %41 = arith.mulf %38, %40 : vector<16x512xf32>
    %42 = arith.truncf %41 : vector<16x512xf32> to vector<16x512xbf16>
    %c32 = arith.constant 32 : index
    %c0_9 = arith.constant 0 : index
    %43 = vector.load %arg5[%c32, %c0_9] : memref<144x512xbf16, #tpu.memory_space<vmem>>, vector<16x512xbf16>
    tpu.vector_store %arg5[%c32, %c0_9], %42 {strides = array<i32>} : memref<144x512xbf16, #tpu.memory_space<vmem>>, vector<16x512xbf16>,
    %c1_i32_10 = arith.constant 1 : i32
    %44 = tpu.dynamic_rotate %5 by %c1_i32_10 dim 1 : vector<16x512xf32>, i32 -> vector<16x512xf32>
    %45 = vector.broadcast %22 : vector<1x512xf32> to vector<16x512xf32>
    %46 = arith.mulf %44, %45 : vector<16x512xf32>
    %47 = arith.truncf %46 : vector<16x512xf32> to vector<16x512xbf16>
    %c48 = arith.constant 48 : index
    %c0_11 = arith.constant 0 : index
    %48 = vector.load %arg5[%c48, %c0_11] : memref<144x512xbf16, #tpu.memory_space<vmem>>, vector<16x512xbf16>
    tpu.vector_store %arg5[%c48, %c0_11], %47 {strides = array<i32>} : memref<144x512xbf16, #tpu.memory_space<vmem>>, vector<16x512xbf16>,
    %49 = arith.truncf %5 : vector<16x512xf32> to vector<16x512xbf16>
    %c64 = arith.constant 64 : index
    %c0_12 = arith.constant 0 : index
    %50 = vector.load %arg5[%c64, %c0_12] : memref<144x512xbf16, #tpu.memory_space<vmem>>, vector<16x512xbf16>
    tpu.vector_store %arg5[%c64, %c0_12], %49 {strides = array<i32>} : memref<144x512xbf16, #tpu.memory_space<vmem>>, vector<16x512xbf16>,
    %c511_i32 = arith.constant 511 : i32
    %51 = tpu.dynamic_rotate %5 by %c511_i32 dim 1 : vector<16x512xf32>, i32 -> vector<16x512xf32>
    %52 = vector.broadcast %26 : vector<1x512xf32> to vector<16x512xf32>
    %53 = arith.mulf %51, %52 : vector<16x512xf32>
    %54 = arith.truncf %53 : vector<16x512xf32> to vector<16x512xbf16>
    %c80 = arith.constant 80 : index
    %c0_13 = arith.constant 0 : index
    %55 = vector.load %arg5[%c80, %c0_13] : memref<144x512xbf16, #tpu.memory_space<vmem>>, vector<16x512xbf16>
    tpu.vector_store %arg5[%c80, %c0_13], %54 {strides = array<i32>} : memref<144x512xbf16, #tpu.memory_space<vmem>>, vector<16x512xbf16>,
    %c497_i32 = arith.constant 497 : i32
    %56 = tpu.dynamic_rotate %5 by %c497_i32 dim 1 : vector<16x512xf32>, i32 -> vector<16x512xf32>
    %57 = arith.mulf %18, %22 : vector<1x512xf32>
    %58 = vector.broadcast %57 : vector<1x512xf32> to vector<16x512xf32>
    %59 = arith.mulf %56, %58 : vector<16x512xf32>
    %60 = arith.truncf %59 : vector<16x512xf32> to vector<16x512xbf16>
    %c96 = arith.constant 96 : index
    %c0_14 = arith.constant 0 : index
    %61 = vector.load %arg5[%c96, %c0_14] : memref<144x512xbf16, #tpu.memory_space<vmem>>, vector<16x512xbf16>
    tpu.vector_store %arg5[%c96, %c0_14], %60 {strides = array<i32>} : memref<144x512xbf16, #tpu.memory_space<vmem>>, vector<16x512xbf16>,
    %c496_i32 = arith.constant 496 : i32
    %62 = tpu.dynamic_rotate %5 by %c496_i32 dim 1 : vector<16x512xf32>, i32 -> vector<16x512xf32>
    %63 = vector.broadcast %18 : vector<1x512xf32> to vector<16x512xf32>
    %64 = arith.mulf %62, %63 : vector<16x512xf32>
    %65 = arith.truncf %64 : vector<16x512xf32> to vector<16x512xbf16>
    %c112 = arith.constant 112 : index
    %c0_15 = arith.constant 0 : index
    %66 = vector.load %arg5[%c112, %c0_15] : memref<144x512xbf16, #tpu.memory_space<vmem>>, vector<16x512xbf16>
    tpu.vector_store %arg5[%c112, %c0_15], %65 {strides = array<i32>} : memref<144x512xbf16, #tpu.memory_space<vmem>>, vector<16x512xbf16>,
    %c495_i32 = arith.constant 495 : i32
    %67 = tpu.dynamic_rotate %5 by %c495_i32 dim 1 : vector<16x512xf32>, i32 -> vector<16x512xf32>
    %68 = arith.mulf %18, %26 : vector<1x512xf32>
    %69 = vector.broadcast %68 : vector<1x512xf32> to vector<16x512xf32>
    %70 = arith.mulf %67, %69 : vector<16x512xf32>
    %71 = arith.truncf %70 : vector<16x512xf32> to vector<16x512xbf16>
    %c128 = arith.constant 128 : index
    %c0_16 = arith.constant 0 : index
    %72 = vector.load %arg5[%c128, %c0_16] : memref<144x512xbf16, #tpu.memory_space<vmem>>, vector<16x512xbf16>
    tpu.vector_store %arg5[%c128, %c0_16], %71 {strides = array<i32>} : memref<144x512xbf16, #tpu.memory_space<vmem>>, vector<16x512xbf16>,
    %c0_17 = arith.constant 0 : index
    %c0_18 = arith.constant 0 : index
    %73 = vector.load %arg2[%c0_17, %c0_18] : memref<8x144xbf16, #tpu.memory_space<vmem>>, vector<8x144xbf16>
    %c0_19 = arith.constant 0 : index
    %c0_20 = arith.constant 0 : index
    %74 = vector.load %arg5[%c0_19, %c0_20] : memref<144x512xbf16, #tpu.memory_space<vmem>>, vector<144x512xbf16>
    %cst = arith.constant dense<0.000000e+00> : vector<8x512xf32>
    %75 = tpu.matmul %73, %74, %cst {dimension_numbers = #tpu.dot_dimension_numbers<[1], [0], [0], [1], [0, 0, 1, 1], [], []>} : vector<8x144xbf16>, vector<144x512xbf16>, vector<8x512xf32> -> vector<8x512xf32>
    %76 = vector.extract_strided_slice %75 {offsets = [0, 0], sizes = [8, 256], strides = [1, 1]} : vector<8x512xf32> to vector<8x256xf32>
    %c0_21 = arith.constant 0 : index
    %c0_22 = arith.constant 0 : index
    %c0_23 = arith.constant 0 : index
    %77 = vector.load %arg3[%c0_21, %c0_22, %c0_23] : memref<2x8x1xf32, #tpu.memory_space<vmem>>, vector<1x8x1xf32>
    %78 = vector.shape_cast %77 : vector<1x8x1xf32> to vector<8x1xf32>
    %79 = vector.broadcast %78 : vector<8x1xf32> to vector<8x256xf32>
    %80 = arith.addf %76, %79 : vector<8x256xf32>
    %81 = arith.negf %80 : vector<8x256xf32>
    %82 = math.exp %81 : vector<8x256xf32>
    %cst_24 = arith.constant 1.000000e+00 : f32
    %83 = vector.broadcast %cst_24 : f32 to vector<8x256xf32>
    %84 = arith.addf %83, %82 : vector<8x256xf32>
    %85 = arith.divf %83, %84 : vector<8x256xf32>
    %86 = arith.mulf %80, %85 : vector<8x256xf32>
    %c0_25 = arith.constant 0 : index
    %c0_26 = arith.constant 0 : index
    %c0_27 = arith.constant 0 : index
    %87 = vector.load %arg4[%c0_25, %c0_26, %c0_27] : memref<2x8x256xf32, #tpu.memory_space<vmem>>, vector<1x8x256xf32>
    %88 = vector.shape_cast %87 : vector<1x8x256xf32> to vector<8x256xf32>
    %89 = vector.shape_cast %86 : vector<8x256xf32> to vector<1x8x256xf32>
    tpu.vector_store %arg4[%c0_25, %c0_26, %c0_27], %89 {strides = array<i32>} : memref<2x8x256xf32, #tpu.memory_space<vmem>>, vector<1x8x256xf32>,
    %90 = vector.extract_strided_slice %75 {offsets = [0, 256], sizes = [8, 256], strides = [1, 1]} : vector<8x512xf32> to vector<8x256xf32>
    %c1_28 = arith.constant 1 : index
    %c0_29 = arith.constant 0 : index
    %c0_30 = arith.constant 0 : index
    %91 = vector.load %arg3[%c1_28, %c0_29, %c0_30] : memref<2x8x1xf32, #tpu.memory_space<vmem>>, vector<1x8x1xf32>
    %92 = vector.shape_cast %91 : vector<1x8x1xf32> to vector<8x1xf32>
    %93 = vector.broadcast %92 : vector<8x1xf32> to vector<8x256xf32>
    %94 = arith.addf %90, %93 : vector<8x256xf32>
    %95 = arith.negf %94 : vector<8x256xf32>
    %96 = math.exp %95 : vector<8x256xf32>
    %cst_31 = arith.constant 1.000000e+00 : f32
    %97 = vector.broadcast %cst_31 : f32 to vector<8x256xf32>
    %98 = arith.addf %97, %96 : vector<8x256xf32>
    %99 = arith.divf %97, %98 : vector<8x256xf32>
    %100 = arith.mulf %94, %99 : vector<8x256xf32>
    %c1_32 = arith.constant 1 : index
    %c0_33 = arith.constant 0 : index
    %c0_34 = arith.constant 0 : index
    %101 = vector.load %arg4[%c1_32, %c0_33, %c0_34] : memref<2x8x256xf32, #tpu.memory_space<vmem>>, vector<1x8x256xf32>
    %102 = vector.shape_cast %101 : vector<1x8x256xf32> to vector<8x256xf32>
    %103 = vector.shape_cast %100 : vector<8x256xf32> to vector<1x8x256xf32>
    tpu.vector_store %arg4[%c1_32, %c0_33, %c0_34], %103 {strides = array<i32>} : memref<2x8x256xf32, #tpu.memory_space<vmem>>, vector<1x8x256xf32>,
    return
  }
  func.func @transform_0(%arg0: i32) -> (i32, i32, i32) {
    %c0_i32 = arith.constant 0 : i32
    %c0_i32_0 = arith.constant 0 : i32
    %c0_i32_1 = arith.constant 0 : i32
    return %arg0, %c0_i32, %c0_i32_0 : i32, i32, i32
  }
  func.func @transform_1(%arg0: i32) -> (i32, i32) {
    %c0_i32 = arith.constant 0 : i32
    %c0_i32_0 = arith.constant 0 : i32
    %c0_i32_1 = arith.constant 0 : i32
    return %c0_i32, %c0_i32_0 : i32, i32
  }
  func.func @transform_2(%arg0: i32) -> (i32, i32, i32) {
    %c0_i32 = arith.constant 0 : i32
    %c0_i32_0 = arith.constant 0 : i32
    %c0_i32_1 = arith.constant 0 : i32
    return %arg0, %c0_i32, %c0_i32_0 : i32, i32, i32
  }
  func.func @transform_3(%arg0: i32) -> (i32, i32, i32) {
    %c0_i32 = arith.constant 0 : i32
    %c0_i32_0 = arith.constant 0 : i32
    %c0_i32_1 = arith.constant 0 : i32
    return %arg0, %c0_i32, %c0_i32_0 : i32, i32, i32
  }
}

</mosaic_0001>

<llo_original>
// kernel: module_with_activation.1
$region0: #{module_with_activation.1}
  #allocation0 [shape = 'u32[]', space=smem, size = 0x4, offset = 0x4, fixed_abs, tag = 'smem constant byte address 0x4 - core index']
  #allocation1 [shape = 'u32[72,128]{1,0:T(1,128)}', space=vmem, size = 0x9000, scoped, tag = 'internal scratch']
  #allocation2 [shape = 'bf16[144,512]{1,0:T(8,128)(2,1)}', space=vmem, size = 0x24000, scoped, tag = 'scratch operand']
  %s0 = inlined_call_operand.vmem [shape: bf16[2,16,256], index: 0, kind: input, shape index: {}]
  %s1 = inlined_call_operand.vmem [shape: bf16[8,144], index: 1, kind: input, shape index: {}]
  %s2 = inlined_call_operand.vmem [shape: f32[2,8,1], index: 2, kind: input, shape index: {}]
  %s3 = inlined_call_operand.vmem [shape: f32[2,8,256], index: 3, kind: output, shape index: {}]
  %s4 = sld [smem:[#allocation0]]
  $region22: #{module_with_activation.1} parent=0
    _
  %s6 = ssub.s32 1, %s4
  %s7 = scalar_select 0, %s6, %s4
  // Predicated region
  $region2: #{module_with_activation.1} parent=0 // pred_check
    _
  $region3: #{module_with_activation.1} parent=0 // pred_check_branch
    %9 = sbr.rel (0) target = $region5
  $region4: #{module_with_activation.1} parent=0 // pred_region
    _
  $region5: #{module_with_activation.1} parent=0 // pred_fallthru
    _
  // Predicated region
  $region6: #{module_with_activation.1} parent=0 // pred_check
    _
  $region7: #{module_with_activation.1} parent=0 // pred_check_branch
    %11 = sbr.rel (0) target = $region9
  $region8: #{module_with_activation.1} parent=0 // pred_region
    _
  $region9: #{module_with_activation.1} parent=0 // pred_fallthru
    _
  // Predicated region
  $region10: #{module_with_activation.1} parent=0 // pred_check
    _
  $region11: #{module_with_activation.1} parent=0 // pred_check_branch
    %13 = sbr.rel (0) target = $region13
  $region12: #{module_with_activation.1} parent=0 // pred_region
    _
  $region13: #{module_with_activation.1} parent=0 // pred_fallthru
    _
  %v15 = vld [vmem:[%s0] sm:$0xff]
  %v16 = vld [vmem:[%s0 + $0x8] sm:$0xff]
  %s17 = scalar_lea.vmem %s0, 16
  %v18 = vld [vmem:[%s17] sm:$0xff]
  %v19 = vld [vmem:[%s17 + $0x8] sm:$0xff]
  %v22 = vunpack.c.l.b16 %v15
  %v23 = vunpack.c.h.b16 %v15
  %v24 = vunpack.c.l.b16 %v16
  %v25 = vunpack.c.h.b16 %v16
  %v26 = vpack.c.b16 %v24, %v22
  %v27 = vpack.c.b16 %v25, %v23
  %v32 = vunpack.c.l.b16 %v18
  %v33 = vunpack.c.h.b16 %v18
  %v34 = vunpack.c.l.b16 %v19
  %v35 = vunpack.c.h.b16 %v19
  %v36 = vpack.c.b16 %v34, %v32
  %v37 = vpack.c.b16 %v35, %v33
  %v40 = vunpack.c.l.bf16 %v26
  %v41 = vunpack.c.l.bf16 %v27
  %v42 = vunpack.c.l.bf16 %v36
  %v43 = vunpack.c.l.bf16 %v37
  %v44 = vunpack.c.h.bf16 %v26
  %v45 = vunpack.c.h.bf16 %v27
  %v46 = vunpack.c.h.bf16 %v36
  %v47 = vunpack.c.h.bf16 %v37
  %v48 = vlaneseq
  %v49 = vand.u32 %v48, 127
  %v50 = vadd.s32 %v49, 128
  %v51 = vadd.s32 %v49, 256
  %v52 = vadd.s32 %v49, 384
  %v53 = vand.u32 %v49, 255
  %v54 = vand.u32 %v50, 255
  %v55 = vand.u32 %v51, 255
  %v56 = vand.u32 %v52, 255
  %v57 = vand.u32 %v49, 15
  %v58 = vand.u32 %v50, 15
  %v59 = vand.u32 %v51, 15
  %v60 = vand.u32 %v52, 15
  %vm61 = vcmp.ge.s32.totalorder %v53, 16
  %vm62 = vcmp.ge.s32.totalorder %v54, 16
  %vm63 = vcmp.ge.s32.totalorder %v55, 16
  %vm64 = vcmp.ge.s32.totalorder %v56, 16
  %v65 = vsel %vm61, 1, 0
  %v66 = vsel %vm62, 1, 0
  %v67 = vsel %vm63, 1, 0
  %v68 = vsel %vm64, 1, 0
  %v69 = vcvt.s32.f32 %v65
  %v70 = vcvt.s32.f32 %v66
  %v71 = vcvt.s32.f32 %v67
  %v72 = vcvt.s32.f32 %v68
  %vm73 = vcmp.lt.s32.totalorder %v53, 240
  %vm74 = vcmp.lt.s32.totalorder %v54, 240
  %vm75 = vcmp.lt.s32.totalorder %v55, 240
  %vm76 = vcmp.lt.s32.totalorder %v56, 240
  %v77 = vsel %vm73, 1, 0
  %v78 = vsel %vm74, 1, 0
  %v79 = vsel %vm75, 1, 0
  %v80 = vsel %vm76, 1, 0
  %v81 = vcvt.s32.f32 %v77
  %v82 = vcvt.s32.f32 %v78
  %v83 = vcvt.s32.f32 %v79
  %v84 = vcvt.s32.f32 %v80
  %vm85 = vcmp.ge.s32.totalorder %v57, 1
  %vm86 = vcmp.ge.s32.totalorder %v58, 1
  %vm87 = vcmp.ge.s32.totalorder %v59, 1
  %vm88 = vcmp.ge.s32.totalorder %v60, 1
  %v89 = vsel %vm85, 1, 0
  %v90 = vsel %vm86, 1, 0
  %v91 = vsel %vm87, 1, 0
  %v92 = vsel %vm88, 1, 0
  %v93 = vcvt.s32.f32 %v89
  %v94 = vcvt.s32.f32 %v90
  %v95 = vcvt.s32.f32 %v91
  %v96 = vcvt.s32.f32 %v92
  %vm97 = vcmp.le.s32.totalorder %v57, 14
  %vm98 = vcmp.le.s32.totalorder %v58, 14
  %vm99 = vcmp.le.s32.totalorder %v59, 14
  %vm100 = vcmp.le.s32.totalorder %v60, 14
  %v101 = vsel %vm97, 1, 0
  %v102 = vsel %vm98, 1, 0
  %v103 = vsel %vm99, 1, 0
  %v104 = vsel %vm100, 1, 0
  %v105 = vcvt.s32.f32 %v101
  %v106 = vcvt.s32.f32 %v102
  %v107 = vcvt.s32.f32 %v103
  %v108 = vcvt.s32.f32 %v104
  %109 = vrot.lane.b32.xlu0 %v40, 17
  %v110 = vpop.permute.xlu0 %109
  %111 = vrot.lane.b32.xlu0 %v44, 17
  %v112 = vpop.permute.xlu0 %111
  %113 = vrot.lane.b32.xlu0 %v41, 17
  %v114 = vpop.permute.xlu0 %113
  %115 = vrot.lane.b32.xlu0 %v45, 17
  %v116 = vpop.permute.xlu0 %115
  %117 = vrot.lane.b32.xlu0 %v42, 17
  %v118 = vpop.permute.xlu0 %117
  %119 = vrot.lane.b32.xlu0 %v46, 17
  %v120 = vpop.permute.xlu0 %119
  %121 = vrot.lane.b32.xlu0 %v43, 17
  %v122 = vpop.permute.xlu0 %121
  %123 = vrot.lane.b32.xlu0 %v47, 17
  %v124 = vpop.permute.xlu0 %123
  %vm125 = vcmp.lt.s32.totalorder %v49, 17
  %v126 = vsel %vm125, %v118, %v122
  %v127 = vsel %vm125, %v120, %v124
  %v128 = vsel %vm125, %v114, %v118
  %v129 = vsel %vm125, %v116, %v120
  %v130 = vsel %vm125, %v110, %v114
  %v131 = vsel %vm125, %v112, %v116
  %v132 = vsel %vm125, %v122, %v110
  %v133 = vsel %vm125, %v124, %v112
  %v134 = vmul.f32 %v69, %v93
  %v135 = vmul.f32 %v70, %v94
  %v136 = vmul.f32 %v71, %v95
  %v137 = vmul.f32 %v72, %v96
  %v138 = vmul.f32 %v132, %v134
  %v139 = vmul.f32 %v130, %v135
  %v140 = vmul.f32 %v128, %v136
  %v141 = vmul.f32 %v126, %v137
  %v142 = vmul.f32 %v133, %v134
  %v143 = vmul.f32 %v131, %v135
  %v144 = vmul.f32 %v129, %v136
  %v145 = vmul.f32 %v127, %v137
  %v146 = vpack.c.bf16 %v139, %v138
  %v147 = vpack.c.bf16 %v141, %v140
  %v148 = vpack.c.bf16 %v143, %v142
  %v149 = vpack.c.bf16 %v145, %v144
  %150 = vst [vmem:[#allocation2] sm:$0xff] %v146
  %151 = vst [vmem:[#allocation2 + $0x8] sm:$0xff] %v147
  %152 = vst [vmem:[#allocation2 + $0x10] sm:$0xff] %v148
  %153 = vst [vmem:[#allocation2 + $0x18] sm:$0xff] %v149
  %154 = vrot.lane.b32.xlu0 %v40, 16
  %v155 = vpop.permute.xlu0 %154
  %156 = vrot.lane.b32.xlu0 %v44, 16
  %v157 = vpop.permute.xlu0 %156
  %158 = vrot.lane.b32.xlu0 %v41, 16
  %v159 = vpop.permute.xlu0 %158
  %160 = vrot.lane.b32.xlu0 %v45, 16
  %v161 = vpop.permute.xlu0 %160
  %162 = vrot.lane.b32.xlu0 %v42, 16
  %v163 = vpop.permute.xlu0 %162
  %164 = vrot.lane.b32.xlu0 %v46, 16
  %v165 = vpop.permute.xlu0 %164
  %166 = vrot.lane.b32.xlu0 %v43, 16
  %v167 = vpop.permute.xlu0 %166
  %168 = vrot.lane.b32.xlu0 %v47, 16
  %v169 = vpop.permute.xlu0 %168
  %vm170 = vcmp.lt.s32.totalorder %v49, 16
  %v171 = vsel %vm170, %v163, %v167
  %v172 = vsel %vm170, %v165, %v169
  %v173 = vsel %vm170, %v159, %v163
  %v174 = vsel %vm170, %v161, %v165
  %v175 = vsel %vm170, %v155, %v159
  %v176 = vsel %vm170, %v157, %v161
  %v177 = vsel %vm170, %v167, %v155
  %v178 = vsel %vm170, %v169, %v157
  %v179 = vmul.f32 %v177, %v69
  %v180 = vmul.f32 %v175, %v70
  %v181 = vmul.f32 %v173, %v71
  %v182 = vmul.f32 %v171, %v72
  %v183 = vmul.f32 %v178, %v69
  %v184 = vmul.f32 %v176, %v70
  %v185 = vmul.f32 %v174, %v71
  %v186 = vmul.f32 %v172, %v72
  %v187 = vpack.c.bf16 %v180, %v179
  %v188 = vpack.c.bf16 %v182, %v181
  %v189 = vpack.c.bf16 %v184, %v183
  %v190 = vpack.c.bf16 %v186, %v185
  %191 = vst [vmem:[#allocation2 + $0x20] sm:$0xff] %v187
  %192 = vst [vmem:[#allocation2 + $0x28] sm:$0xff] %v188
  %193 = vst [vmem:[#allocation2 + $0x30] sm:$0xff] %v189
  %194 = vst [vmem:[#allocation2 + $0x38] sm:$0xff] %v190
  %195 = vrot.lane.b32.xlu0 %v40, 15
  %v196 = vpop.permute.xlu0 %195
  %197 = vrot.lane.b32.xlu0 %v44, 15
  %v198 = vpop.permute.xlu0 %197
  %199 = vrot.lane.b32.xlu0 %v41, 15
  %v200 = vpop.permute.xlu0 %199
  %201 = vrot.lane.b32.xlu0 %v45, 15
  %v202 = vpop.permute.xlu0 %201
  %203 = vrot.lane.b32.xlu0 %v42, 15
  %v204 = vpop.permute.xlu0 %203
  %205 = vrot.lane.b32.xlu0 %v46, 15
  %v206 = vpop.permute.xlu0 %205
  %207 = vrot.lane.b32.xlu0 %v43, 15
  %v208 = vpop.permute.xlu0 %207
  %209 = vrot.lane.b32.xlu0 %v47, 15
  %v210 = vpop.permute.xlu0 %209
  %vm211 = vcmp.lt.s32.totalorder %v49, 15
  %v212 = vsel %vm211, %v204, %v208
  %v213 = vsel %vm211, %v206, %v210
  %v214 = vsel %vm211, %v200, %v204
  %v215 = vsel %vm211, %v202, %v206
  %v216 = vsel %vm211, %v196, %v200
  %v217 = vsel %vm211, %v198, %v202
  %v218 = vsel %vm211, %v208, %v196
  %v219 = vsel %vm211, %v210, %v198
  %v220 = vmul.f32 %v69, %v105
  %v221 = vmul.f32 %v70, %v106
  %v222 = vmul.f32 %v71, %v107
  %v223 = vmul.f32 %v72, %v108
  %v224 = vmul.f32 %v218, %v220
  %v225 = vmul.f32 %v216, %v221
  %v226 = vmul.f32 %v214, %v222
  %v227 = vmul.f32 %v212, %v223
  %v228 = vmul.f32 %v219, %v220
  %v229 = vmul.f32 %v217, %v221
  %v230 = vmul.f32 %v215, %v222
  %v231 = vmul.f32 %v213, %v223
  %v232 = vpack.c.bf16 %v225, %v224
  %v233 = vpack.c.bf16 %v227, %v226
  %v234 = vpack.c.bf16 %v229, %v228
  %v235 = vpack.c.bf16 %v231, %v230
  %236 = vst [vmem:[#allocation2 + $0x40] sm:$0xff] %v232
  %237 = vst [vmem:[#allocation2 + $0x48] sm:$0xff] %v233
  %238 = vst [vmem:[#allocation2 + $0x50] sm:$0xff] %v234
  %239 = vst [vmem:[#allocation2 + $0x58] sm:$0xff] %v235
  %240 = vrot.lane.b32.xlu0 %v40, 1
  %v241 = vpop.permute.xlu0 %240
  %242 = vrot.lane.b32.xlu0 %v44, 1
  %v243 = vpop.permute.xlu0 %242
  %244 = vrot.lane.b32.xlu0 %v41, 1
  %v245 = vpop.permute.xlu0 %244
  %246 = vrot.lane.b32.xlu0 %v45, 1
  %v247 = vpop.permute.xlu0 %246
  %248 = vrot.lane.b32.xlu0 %v42, 1
  %v249 = vpop.permute.xlu0 %248
  %250 = vrot.lane.b32.xlu0 %v46, 1
  %v251 = vpop.permute.xlu0 %250
  %252 = vrot.lane.b32.xlu0 %v43, 1
  %v253 = vpop.permute.xlu0 %252
  %254 = vrot.lane.b32.xlu0 %v47, 1
  %v255 = vpop.permute.xlu0 %254
  %vm256 = vcmp.lt.s32.totalorder %v49, 1
  %v257 = vsel %vm256, %v249, %v253
  %v258 = vsel %vm256, %v251, %v255
  %v259 = vsel %vm256, %v245, %v249
  %v260 = vsel %vm256, %v247, %v251
  %v261 = vsel %vm256, %v241, %v245
  %v262 = vsel %vm256, %v243, %v247
  %v263 = vsel %vm256, %v253, %v241
  %v264 = vsel %vm256, %v255, %v243
  %v265 = vmul.f32 %v263, %v93
  %v266 = vmul.f32 %v261, %v94
  %v267 = vmul.f32 %v259, %v95
  %v268 = vmul.f32 %v257, %v96
  %v269 = vmul.f32 %v264, %v93
  %v270 = vmul.f32 %v262, %v94
  %v271 = vmul.f32 %v260, %v95
  %v272 = vmul.f32 %v258, %v96
  %v273 = vpack.c.bf16 %v266, %v265
  %v274 = vpack.c.bf16 %v268, %v267
  %v275 = vpack.c.bf16 %v270, %v269
  %v276 = vpack.c.bf16 %v272, %v271
  %277 = vst [vmem:[#allocation2 + $0x60] sm:$0xff] %v273
  %278 = vst [vmem:[#allocation2 + $0x68] sm:$0xff] %v274
  %279 = vst [vmem:[#allocation2 + $0x70] sm:$0xff] %v275
  %280 = vst [vmem:[#allocation2 + $0x78] sm:$0xff] %v276
  %v281 = vpack.c.b16 %v23, %v22
  %v282 = vpack.c.b16 %v33, %v32
  %v283 = vpack.c.b16 %v25, %v24
  %v284 = vpack.c.b16 %v35, %v34
  %289 = vst [vmem:[#allocation2 + $0x80] sm:$0xff] %v281
  %290 = vst [vmem:[#allocation2 + $0x88] sm:$0xff] %v282
  %291 = vst [vmem:[#allocation2 + $0x90] sm:$0xff] %v283
  %292 = vst [vmem:[#allocation2 + $0x98] sm:$0xff] %v284
  %293 = vrot.lane.b32.xlu0 %v40, 127
  %v294 = vpop.permute.xlu0 %293
  %295 = vrot.lane.b32.xlu0 %v44, 127
  %v296 = vpop.permute.xlu0 %295
  %297 = vrot.lane.b32.xlu0 %v41, 127
  %v298 = vpop.permute.xlu0 %297
  %299 = vrot.lane.b32.xlu0 %v45, 127
  %v300 = vpop.permute.xlu0 %299
  %301 = vrot.lane.b32.xlu0 %v42, 127
  %v302 = vpop.permute.xlu0 %301
  %303 = vrot.lane.b32.xlu0 %v46, 127
  %v304 = vpop.permute.xlu0 %303
  %305 = vrot.lane.b32.xlu0 %v43, 127
  %v306 = vpop.permute.xlu0 %305
  %307 = vrot.lane.b32.xlu0 %v47, 127
  %v308 = vpop.permute.xlu0 %307
  %vm309 = vcmp.lt.s32.totalorder %v49, 127
  %v310 = vsel %vm309, %v302, %v306
  %v311 = vsel %vm309, %v304, %v308
  %v312 = vsel %vm309, %v298, %v302
  %v313 = vsel %vm309, %v300, %v304
  %v314 = vsel %vm309, %v294, %v298
  %v315 = vsel %vm309, %v296, %v300
  %v316 = vsel %vm309, %v306, %v294
  %v317 = vsel %vm309, %v308, %v296
  %v318 = vmul.f32 %v314, %v105
  %v319 = vmul.f32 %v312, %v106
  %v320 = vmul.f32 %v310, %v107
  %v321 = vmul.f32 %v316, %v108
  %v322 = vmul.f32 %v315, %v105
  %v323 = vmul.f32 %v313, %v106
  %v324 = vmul.f32 %v311, %v107
  %v325 = vmul.f32 %v317, %v108
  %v326 = vpack.c.bf16 %v319, %v318
  %v327 = vpack.c.bf16 %v321, %v320
  %v328 = vpack.c.bf16 %v323, %v322
  %v329 = vpack.c.bf16 %v325, %v324
  %330 = vst [vmem:[#allocation2 + $0xa0] sm:$0xff] %v326
  %331 = vst [vmem:[#allocation2 + $0xa8] sm:$0xff] %v327
  %332 = vst [vmem:[#allocation2 + $0xb0] sm:$0xff] %v328
  %333 = vst [vmem:[#allocation2 + $0xb8] sm:$0xff] %v329
  %334 = vrot.lane.b32.xlu0 %v40, 113
  %v335 = vpop.permute.xlu0 %334
  %336 = vrot.lane.b32.xlu0 %v44, 113
  %v337 = vpop.permute.xlu0 %336
  %338 = vrot.lane.b32.xlu0 %v41, 113
  %v339 = vpop.permute.xlu0 %338
  %340 = vrot.lane.b32.xlu0 %v45, 113
  %v341 = vpop.permute.xlu0 %340
  %342 = vrot.lane.b32.xlu0 %v42, 113
  %v343 = vpop.permute.xlu0 %342
  %344 = vrot.lane.b32.xlu0 %v46, 113
  %v345 = vpop.permute.xlu0 %344
  %346 = vrot.lane.b32.xlu0 %v43, 113
  %v347 = vpop.permute.xlu0 %346
  %348 = vrot.lane.b32.xlu0 %v47, 113
  %v349 = vpop.permute.xlu0 %348
  %vm350 = vcmp.lt.s32.totalorder %v49, 113
  %v351 = vsel %vm350, %v343, %v347
  %v352 = vsel %vm350, %v345, %v349
  %v353 = vsel %vm350, %v339, %v343
  %v354 = vsel %vm350, %v341, %v345
  %v355 = vsel %vm350, %v335, %v339
  %v356 = vsel %vm350, %v337, %v341
  %v357 = vsel %vm350, %v347, %v335
  %v358 = vsel %vm350, %v349, %v337
  %v359 = vmul.f32 %v81, %v93
  %v360 = vmul.f32 %v82, %v94
  %v361 = vmul.f32 %v83, %v95
  %v362 = vmul.f32 %v84, %v96
  %v363 = vmul.f32 %v355, %v359
  %v364 = vmul.f32 %v353, %v360
  %v365 = vmul.f32 %v351, %v361
  %v366 = vmul.f32 %v357, %v362
  %v367 = vmul.f32 %v356, %v359
  %v368 = vmul.f32 %v354, %v360
  %v369 = vmul.f32 %v352, %v361
  %v370 = vmul.f32 %v358, %v362
  %v371 = vpack.c.bf16 %v364, %v363
  %v372 = vpack.c.bf16 %v366, %v365
  %v373 = vpack.c.bf16 %v368, %v367
  %v374 = vpack.c.bf16 %v370, %v369
  %375 = vst [vmem:[#allocation2 + $0xc0] sm:$0xff] %v371
  %376 = vst [vmem:[#allocation2 + $0xc8] sm:$0xff] %v372
  %377 = vst [vmem:[#allocation2 + $0xd0] sm:$0xff] %v373
  %378 = vst [vmem:[#allocation2 + $0xd8] sm:$0xff] %v374
  %379 = vrot.lane.b32.xlu0 %v40, 112
  %v380 = vpop.permute.xlu0 %379
  %381 = vrot.lane.b32.xlu0 %v44, 112
  %v382 = vpop.permute.xlu0 %381
  %383 = vrot.lane.b32.xlu0 %v41, 112
  %v384 = vpop.permute.xlu0 %383
  %385 = vrot.lane.b32.xlu0 %v45, 112
  %v386 = vpop.permute.xlu0 %385
  %387 = vrot.lane.b32.xlu0 %v42, 112
  %v388 = vpop.permute.xlu0 %387
  %389 = vrot.lane.b32.xlu0 %v46, 112
  %v390 = vpop.permute.xlu0 %389
  %391 = vrot.lane.b32.xlu0 %v43, 112
  %v392 = vpop.permute.xlu0 %391
  %393 = vrot.lane.b32.xlu0 %v47, 112
  %v394 = vpop.permute.xlu0 %393
  %vm395 = vcmp.lt.s32.totalorder %v49, 112
  %v396 = vsel %vm395, %v388, %v392
  %v397 = vsel %vm395, %v390, %v394
  %v398 = vsel %vm395, %v384, %v388
  %v399 = vsel %vm395, %v386, %v390
  %v400 = vsel %vm395, %v380, %v384
  %v401 = vsel %vm395, %v382, %v386
  %v402 = vsel %vm395, %v392, %v380
  %v403 = vsel %vm395, %v394, %v382
  %v404 = vmul.f32 %v400, %v81
  %v405 = vmul.f32 %v398, %v82
  %v406 = vmul.f32 %v396, %v83
  %v407 = vmul.f32 %v402, %v84
  %v408 = vmul.f32 %v401, %v81
  %v409 = vmul.f32 %v399, %v82
  %v410 = vmul.f32 %v397, %v83
  %v411 = vmul.f32 %v403, %v84
  %v412 = vpack.c.bf16 %v405, %v404
  %v413 = vpack.c.bf16 %v407, %v406
  %v414 = vpack.c.bf16 %v409, %v408
  %v415 = vpack.c.bf16 %v411, %v410
  %416 = vst [vmem:[#allocation2 + $0xe0] sm:$0xff] %v412
  %417 = vst [vmem:[#allocation2 + $0xe8] sm:$0xff] %v413
  %418 = vst [vmem:[#allocation2 + $0xf0] sm:$0xff] %v414
  %419 = vst [vmem:[#allocation2 + $0xf8] sm:$0xff] %v415
  %420 = vrot.lane.b32.xlu0 %v40, 111
  %v421 = vpop.permute.xlu0 %420
  %422 = vrot.lane.b32.xlu0 %v44, 111
  %v423 = vpop.permute.xlu0 %422
  %424 = vrot.lane.b32.xlu0 %v41, 111
  %v425 = vpop.permute.xlu0 %424
  %426 = vrot.lane.b32.xlu0 %v45, 111
  %v427 = vpop.permute.xlu0 %426
  %428 = vrot.lane.b32.xlu0 %v42, 111
  %v429 = vpop.permute.xlu0 %428
  %430 = vrot.lane.b32.xlu0 %v46, 111
  %v431 = vpop.permute.xlu0 %430
  %432 = vrot.lane.b32.xlu0 %v43, 111
  %v433 = vpop.permute.xlu0 %432
  %434 = vrot.lane.b32.xlu0 %v47, 111
  %v435 = vpop.permute.xlu0 %434
  %vm436 = vcmp.lt.s32.totalorder %v49, 111
  %v437 = vsel %vm436, %v429, %v433
  %v438 = vsel %vm436, %v431, %v435
  %v439 = vsel %vm436, %v425, %v429
  %v440 = vsel %vm436, %v427, %v431
  %v441 = vsel %vm436, %v421, %v425
  %v442 = vsel %vm436, %v423, %v427
  %v443 = vsel %vm436, %v433, %v421
  %v444 = vsel %vm436, %v435, %v423
  %v445 = vmul.f32 %v81, %v105
  %v446 = vmul.f32 %v82, %v106
  %v447 = vmul.f32 %v83, %v107
  %v448 = vmul.f32 %v84, %v108
  %v449 = vmul.f32 %v441, %v445
  %v450 = vmul.f32 %v439, %v446
  %v451 = vmul.f32 %v437, %v447
  %v452 = vmul.f32 %v443, %v448
  %v453 = vmul.f32 %v442, %v445
  %v454 = vmul.f32 %v440, %v446
  %v455 = vmul.f32 %v438, %v447
  %v456 = vmul.f32 %v444, %v448
  %v457 = vpack.c.bf16 %v450, %v449
  %v458 = vpack.c.bf16 %v452, %v451
  %v459 = vpack.c.bf16 %v454, %v453
  %v460 = vpack.c.bf16 %v456, %v455
  %461 = vst [vmem:[#allocation2 + $0x100] sm:$0xff] %v457
  %462 = vst [vmem:[#allocation2 + $0x108] sm:$0xff] %v458
  %463 = vst [vmem:[#allocation2 + $0x110] sm:$0xff] %v459
  %464 = vst [vmem:[#allocation2 + $0x118] sm:$0xff] %v460
  %v465 = vld [vmem:[%s1] sm:$0xff]
  %v466 = vld [vmem:[#allocation2] sm:$0xff]
  %v467 = vld [vmem:[#allocation2 + $0x8] sm:$0xff]
  %v468 = vld [vmem:[#allocation2 + $0x10] sm:$0xff]
  %v469 = vld [vmem:[#allocation2 + $0x18] sm:$0xff]
  %v470 = vld [vmem:[#allocation2 + $0x20] sm:$0xff]
  %v471 = vld [vmem:[#allocation2 + $0x28] sm:$0xff]
  %v472 = vld [vmem:[#allocation2 + $0x30] sm:$0xff]
  %v473 = vld [vmem:[#allocation2 + $0x38] sm:$0xff]
  %v474 = vld [vmem:[#allocation2 + $0x40] sm:$0xff]
  %v475 = vld [vmem:[#allocation2 + $0x48] sm:$0xff]
  %v476 = vld [vmem:[#allocation2 + $0x50] sm:$0xff]
  %v477 = vld [vmem:[#allocation2 + $0x58] sm:$0xff]
  %v478 = vld [vmem:[#allocation2 + $0x60] sm:$0xff]
  %v479 = vld [vmem:[#allocation2 + $0x68] sm:$0xff]
  %v480 = vld [vmem:[#allocation2 + $0x70] sm:$0xff]
  %v481 = vld [vmem:[#allocation2 + $0x78] sm:$0xff]
  %v482 = vld [vmem:[#allocation2 + $0x80] sm:$0xff]
  %v483 = vld [vmem:[#allocation2 + $0x88] sm:$0xff]
  %v484 = vld [vmem:[#allocation2 + $0x90] sm:$0xff]
  %v485 = vld [vmem:[#allocation2 + $0x98] sm:$0xff]
  %v486 = vld [vmem:[#allocation2 + $0xa0] sm:$0xff]
  %v487 = vld [vmem:[#allocation2 + $0xa8] sm:$0xff]
  %v488 = vld [vmem:[#allocation2 + $0xb0] sm:$0xff]
  %v489 = vld [vmem:[#allocation2 + $0xb8] sm:$0xff]
  %v490 = vld [vmem:[#allocation2 + $0xc0] sm:$0xff]
  %v491 = vld [vmem:[#allocation2 + $0xc8] sm:$0xff]
  %v492 = vld [vmem:[#allocation2 + $0xd0] sm:$0xff]
  %v493 = vld [vmem:[#allocation2 + $0xd8] sm:$0xff]
  %v494 = vld [vmem:[#allocation2 + $0xe0] sm:$0xff]
  %v495 = vld [vmem:[#allocation2 + $0xe8] sm:$0xff]
  %v496 = vld [vmem:[#allocation2 + $0xf0] sm:$0xff]
  %v497 = vld [vmem:[#allocation2 + $0xf8] sm:$0xff]
  %v498 = vld [vmem:[#allocation2 + $0x100] sm:$0xff]
  %v499 = vld [vmem:[#allocation2 + $0x108] sm:$0xff]
  %v500 = vld [vmem:[#allocation2 + $0x110] sm:$0xff]
  %v501 = vld [vmem:[#allocation2 + $0x118] sm:$0xff]
  %v503 = vunpack.c.l.b16 %v465
  %v504 = vunpack.c.h.b16 %v465
  %v505 = vpack.c.b16 %v503, %v503
  %v506 = vpack.c.b16 %v504, %v504
  %v544 = vunpack.c.l.b16 %v466
  %v545 = vunpack.c.h.b16 %v466
  %v546 = vunpack.c.l.b16 %v467
  %v547 = vunpack.c.h.b16 %v467
  %v548 = vunpack.c.l.b16 %v468
  %v549 = vunpack.c.h.b16 %v468
  %v550 = vunpack.c.l.b16 %v469
  %v551 = vunpack.c.h.b16 %v469
  %v552 = vunpack.c.l.b16 %v470
  %v553 = vunpack.c.h.b16 %v470
  %v554 = vunpack.c.l.b16 %v471
  %v555 = vunpack.c.h.b16 %v471
  %v556 = vunpack.c.l.b16 %v472
  %v557 = vunpack.c.h.b16 %v472
  %v558 = vunpack.c.l.b16 %v473
  %v559 = vunpack.c.h.b16 %v473
  %v560 = vunpack.c.l.b16 %v474
  %v561 = vunpack.c.h.b16 %v474
  %v562 = vunpack.c.l.b16 %v475
  %v563 = vunpack.c.h.b16 %v475
  %v564 = vunpack.c.l.b16 %v476
  %v565 = vunpack.c.h.b16 %v476
  %v566 = vunpack.c.l.b16 %v477
  %v567 = vunpack.c.h.b16 %v477
  %v568 = vunpack.c.l.b16 %v478
  %v569 = vunpack.c.h.b16 %v478
  %v570 = vunpack.c.l.b16 %v479
  %v571 = vunpack.c.h.b16 %v479
  %v572 = vunpack.c.l.b16 %v480
  %v573 = vunpack.c.h.b16 %v480
  %v574 = vunpack.c.l.b16 %v481
  %v575 = vunpack.c.h.b16 %v481
  %v576 = vunpack.c.l.b16 %v482
  %v577 = vunpack.c.h.b16 %v482
  %v578 = vunpack.c.l.b16 %v483
  %v579 = vunpack.c.h.b16 %v483
  %v580 = vunpack.c.l.b16 %v484
  %v581 = vunpack.c.h.b16 %v484
  %v582 = vunpack.c.l.b16 %v485
  %v583 = vunpack.c.h.b16 %v485
  %v584 = vunpack.c.l.b16 %v486
  %v585 = vunpack.c.h.b16 %v486
  %v586 = vunpack.c.l.b16 %v487
  %v587 = vunpack.c.h.b16 %v487
  %v588 = vunpack.c.l.b16 %v488
  %v589 = vunpack.c.h.b16 %v488
  %v590 = vunpack.c.l.b16 %v489
  %v591 = vunpack.c.h.b16 %v489
  %v592 = vunpack.c.l.b16 %v490
  %v593 = vunpack.c.h.b16 %v490
  %v594 = vunpack.c.l.b16 %v491
  %v595 = vunpack.c.h.b16 %v491
  %v596 = vunpack.c.l.b16 %v492
  %v597 = vunpack.c.h.b16 %v492
  %v598 = vunpack.c.l.b16 %v493
  %v599 = vunpack.c.h.b16 %v493
  %v600 = vunpack.c.l.b16 %v494
  %v601 = vunpack.c.h.b16 %v494
  %v602 = vunpack.c.l.b16 %v495
  %v603 = vunpack.c.h.b16 %v495
  %v604 = vunpack.c.l.b16 %v496
  %v605 = vunpack.c.h.b16 %v496
  %v606 = vunpack.c.l.b16 %v497
  %v607 = vunpack.c.h.b16 %v497
  %v608 = vunpack.c.l.b16 %v498
  %v609 = vunpack.c.h.b16 %v498
  %v610 = vunpack.c.l.b16 %v499
  %v611 = vunpack.c.h.b16 %v499
  %v612 = vunpack.c.l.b16 %v500
  %v613 = vunpack.c.h.b16 %v500
  %v614 = vunpack.c.l.b16 %v501
  %v615 = vunpack.c.h.b16 %v501
  %v616 = vpack.c.b16 %v548, %v544
  %v617 = vpack.c.b16 %v549, %v545
  %v618 = vpack.c.b16 %v550, %v546
  %v619 = vpack.c.b16 %v551, %v547
  %v620 = vpack.c.b16 %v556, %v552
  %v621 = vpack.c.b16 %v557, %v553
  %v622 = vpack.c.b16 %v558, %v554
  %v623 = vpack.c.b16 %v559, %v555
  %v624 = vpack.c.b16 %v564, %v560
  %v625 = vpack.c.b16 %v565, %v561
  %v626 = vpack.c.b16 %v566, %v562
  %v627 = vpack.c.b16 %v567, %v563
  %v628 = vpack.c.b16 %v572, %v568
  %v629 = vpack.c.b16 %v573, %v569
  %v630 = vpack.c.b16 %v574, %v570
  %v631 = vpack.c.b16 %v575, %v571
  %v632 = vpack.c.b16 %v580, %v576
  %v633 = vpack.c.b16 %v581, %v577
  %v634 = vpack.c.b16 %v582, %v578
  %v635 = vpack.c.b16 %v583, %v579
  %v636 = vpack.c.b16 %v588, %v584
  %v637 = vpack.c.b16 %v589, %v585
  %v638 = vpack.c.b16 %v590, %v586
  %v639 = vpack.c.b16 %v591, %v587
  %v640 = vpack.c.b16 %v596, %v592
  %v641 = vpack.c.b16 %v597, %v593
  %v642 = vpack.c.b16 %v598, %v594
  %v643 = vpack.c.b16 %v599, %v595
  %v644 = vpack.c.b16 %v604, %v600
  %v645 = vpack.c.b16 %v605, %v601
  %v646 = vpack.c.b16 %v606, %v602
  %v647 = vpack.c.b16 %v607, %v603
  %v648 = vpack.c.b16 %v612, %v608
  %v649 = vpack.c.b16 %v613, %v609
  %v650 = vpack.c.b16 %v614, %v610
  %v651 = vpack.c.b16 %v615, %v611
  %vm688 = vcmask 130048
  %v690 = vsel %vm688, %v506, 0
  %692 = vmatpush.bf16.msra.mxu0 %v644
  %693 = vmatpush.bf16.msra.mxu0 %v640
  %694 = vmatpush.bf16.msra.mxu0 %v636
  %695 = vmatpush.bf16.msra.mxu0 %v632
  %696 = vmatpush.bf16.msra.mxu0 %v628
  %697 = vmatpush.bf16.msra.mxu0 %v624
  %698 = vmatpush.bf16.msra.mxu0 %v620
  %699 = vmatpush.bf16.msra.mxu0 %v616
  %700 = vmatmul.bf16.gmra.mxu0 %v505
  %v701 = vpop.f32.mrf.mxu0
  %v702 = vadd.f32 0.0, %v701
  %v703 = vpop.f32.mrf.mxu0
  %704 = vdwg.mxu0
  %705 = vmatpush.bf16.msra.mxu0 0
  %706 = vmatpush.bf16.msra.mxu0 0
  %707 = vmatpush.bf16.msra.mxu0 0
  %708 = vmatpush.bf16.msra.mxu0 0
  %709 = vmatpush.bf16.msra.mxu0 0
  %710 = vmatpush.bf16.msra.mxu0 0
  %711 = vmatpush.bf16.msra.mxu0 0
  %712 = vmatpush.bf16.msra.mxu0 %v648
  %713 = vmatmul.bf16.gmra.mxu0 %v690
  %v714 = vpop.f32.mrf.mxu0
  %v715 = vadd.f32 %v702, %v714
  %v716 = vpop.f32.mrf.mxu0
  %717 = vdwg.mxu0
  %718 = vmatpush.bf16.msra.mxu0 %v645
  %719 = vmatpush.bf16.msra.mxu0 %v641
  %720 = vmatpush.bf16.msra.mxu0 %v637
  %721 = vmatpush.bf16.msra.mxu0 %v633
  %722 = vmatpush.bf16.msra.mxu0 %v629
  %723 = vmatpush.bf16.msra.mxu0 %v625
  %724 = vmatpush.bf16.msra.mxu0 %v621
  %725 = vmatpush.bf16.msra.mxu0 %v617
  %726 = vmatmul.bf16.gmra.mxu0 %v505
  %v727 = vpop.f32.mrf.mxu0
  %v728 = vadd.f32 0.0, %v727
  %v729 = vpop.f32.mrf.mxu0
  %730 = vdwg.mxu0
  %731 = vmatpush.bf16.msra.mxu0 0
  %732 = vmatpush.bf16.msra.mxu0 0
  %733 = vmatpush.bf16.msra.mxu0 0
  %734 = vmatpush.bf16.msra.mxu0 0
  %735 = vmatpush.bf16.msra.mxu0 0
  %736 = vmatpush.bf16.msra.mxu0 0
  %737 = vmatpush.bf16.msra.mxu0 0
  %738 = vmatpush.bf16.msra.mxu0 %v649
  %739 = vmatmul.bf16.gmra.mxu0 %v690
  %v740 = vpop.f32.mrf.mxu0
  %v741 = vadd.f32 %v728, %v740
  %v742 = vpop.f32.mrf.mxu0
  %743 = vdwg.mxu0
  %744 = vmatpush.bf16.msra.mxu0 %v646
  %745 = vmatpush.bf16.msra.mxu0 %v642
  %746 = vmatpush.bf16.msra.mxu0 %v638
  %747 = vmatpush.bf16.msra.mxu0 %v634
  %748 = vmatpush.bf16.msra.mxu0 %v630
  %749 = vmatpush.bf16.msra.mxu0 %v626
  %750 = vmatpush.bf16.msra.mxu0 %v622
  %751 = vmatpush.bf16.msra.mxu0 %v618
  %752 = vmatmul.bf16.gmra.mxu0 %v505
  %v753 = vpop.f32.mrf.mxu0
  %v754 = vadd.f32 0.0, %v753
  %v755 = vpop.f32.mrf.mxu0
  %756 = vdwg.mxu0
  %757 = vmatpush.bf16.msra.mxu0 0
  %758 = vmatpush.bf16.msra.mxu0 0
  %759 = vmatpush.bf16.msra.mxu0 0
  %760 = vmatpush.bf16.msra.mxu0 0
  %761 = vmatpush.bf16.msra.mxu0 0
  %762 = vmatpush.bf16.msra.mxu0 0
  %763 = vmatpush.bf16.msra.mxu0 0
  %764 = vmatpush.bf16.msra.mxu0 %v650
  %765 = vmatmul.bf16.gmra.mxu0 %v690
  %v766 = vpop.f32.mrf.mxu0
  %v767 = vadd.f32 %v754, %v766
  %v768 = vpop.f32.mrf.mxu0
  %769 = vdwg.mxu0
  %770 = vmatpush.bf16.msra.mxu0 %v647
  %771 = vmatpush.bf16.msra.mxu0 %v643
  %772 = vmatpush.bf16.msra.mxu0 %v639
  %773 = vmatpush.bf16.msra.mxu0 %v635
  %774 = vmatpush.bf16.msra.mxu0 %v631
  %775 = vmatpush.bf16.msra.mxu0 %v627
  %776 = vmatpush.bf16.msra.mxu0 %v623
  %777 = vmatpush.bf16.msra.mxu0 %v619
  %778 = vmatmul.bf16.gmra.mxu0 %v505
  %v779 = vpop.f32.mrf.mxu0
  %v780 = vadd.f32 0.0, %v779
  %v781 = vpop.f32.mrf.mxu0
  %782 = vdwg.mxu0
  %783 = vmatpush.bf16.msra.mxu0 0
  %784 = vmatpush.bf16.msra.mxu0 0
  %785 = vmatpush.bf16.msra.mxu0 0
  %786 = vmatpush.bf16.msra.mxu0 0
  %787 = vmatpush.bf16.msra.mxu0 0
  %788 = vmatpush.bf16.msra.mxu0 0
  %789 = vmatpush.bf16.msra.mxu0 0
  %790 = vmatpush.bf16.msra.mxu0 %v651
  %791 = vmatmul.bf16.gmra.mxu0 %v690
  %v792 = vpop.f32.mrf.mxu0
  %v793 = vadd.f32 %v780, %v792
  %v794 = vpop.f32.mrf.mxu0
  %795 = vdwg.mxu0
  %v796 = vld [vmem:[%s2] sm:$0xff]
  %798 = vset.pattern.permute.xlu0 0
  %799 = vperm.xlu0 %798, %v796
  %v800 = vpop.permute.xlu0 %799
  %v802 = vadd.f32 %v715, %v800
  %v803 = vadd.f32 %v741, %v800
  %v804 = vxor.u32 %v802, 2147483648
  %v805 = vxor.u32 %v803, 2147483648
  %v806 = vmul.f32 %v804, 1.442695
  %v807 = vpow.pop %v806
  %v808 = vmul.f32 %v805, 1.442695
  %v809 = vpow.pop %v808
  %v810 = vadd.f32 %v807, 1.0
  %v811 = vadd.f32 %v809, 1.0
  %v812 = vrcp.pop %v810
  %v813 = vmul.f32 %v810, %v812
  %v814 = vsub.f32 1.0, %v813
  %v815 = vmul.f32 %v812, %v814
  %v816 = vadd.f32 %v812, %v815
  %vm817 = vweird.f32 %v810
  %vm818 = vweird.f32 %v812
  %vm819 = vmor %vm817, %vm818
  %v820 = vsel %vm819, %v812, %v816
  %v821 = vand.u32 2147483647, %v810
  %vm822 = vcmp.eq.f32.partialorder %v821, 8.507059e+37
  %v823 = vand.u32 %v810, 2147483648
  %v824 = vor.u32 1.1754944e-38, %v823
  %v825 = vsel %vm822, %v824, %v820
  %v826 = vmul.f32 1.0, %v825
  %v827 = vrcp.pop %v811
  %v828 = vmul.f32 %v811, %v827
  %v829 = vsub.f32 1.0, %v828
  %v830 = vmul.f32 %v827, %v829
  %v831 = vadd.f32 %v827, %v830
  %vm832 = vweird.f32 %v811
  %vm833 = vweird.f32 %v827
  %vm834 = vmor %vm832, %vm833
  %v835 = vsel %vm834, %v827, %v831
  %v836 = vand.u32 2147483647, %v811
  %vm837 = vcmp.eq.f32.partialorder %v836, 8.507059e+37
  %v838 = vand.u32 %v811, 2147483648
  %v839 = vor.u32 1.1754944e-38, %v838
  %v840 = vsel %vm837, %v839, %v835
  %v841 = vmul.f32 1.0, %v840
  %v842 = vmul.f32 %v802, %v826
  %v843 = vmul.f32 %v803, %v841
  %844 = vst [vmem:[%s3] sm:$0xff] %v842
  %845 = vst [vmem:[%s3 + $0x8] sm:$0xff] %v843
  %s846 = scalar_lea.vmem %s2, 8
  %v847 = vld [vmem:[%s846] sm:$0xff]
  %849 = vset.pattern.permute.xlu0 0
  %850 = vperm.xlu0 %849, %v847
  %v851 = vpop.permute.xlu0 %850
  %v853 = vadd.f32 %v767, %v851
  %v854 = vadd.f32 %v793, %v851
  %v855 = vxor.u32 %v853, 2147483648
  %v856 = vxor.u32 %v854, 2147483648
  %v857 = vmul.f32 %v855, 1.442695
  %v858 = vpow.pop %v857
  %v859 = vmul.f32 %v856, 1.442695
  %v860 = vpow.pop %v859
  %v861 = vadd.f32 %v858, 1.0
  %v862 = vadd.f32 %v860, 1.0
  %v863 = vrcp.pop %v861
  %v864 = vmul.f32 %v861, %v863
  %v865 = vsub.f32 1.0, %v864
  %v866 = vmul.f32 %v863, %v865
  %v867 = vadd.f32 %v863, %v866
  %vm868 = vweird.f32 %v861
  %vm869 = vweird.f32 %v863
  %vm870 = vmor %vm868, %vm869
  %v871 = vsel %vm870, %v863, %v867
  %v872 = vand.u32 2147483647, %v861
  %vm873 = vcmp.eq.f32.partialorder %v872, 8.507059e+37
  %v874 = vand.u32 %v861, 2147483648
  %v875 = vor.u32 1.1754944e-38, %v874
  %v876 = vsel %vm873, %v875, %v871
  %v877 = vmul.f32 1.0, %v876
  %v878 = vrcp.pop %v862
  %v879 = vmul.f32 %v862, %v878
  %v880 = vsub.f32 1.0, %v879
  %v881 = vmul.f32 %v878, %v880
  %v882 = vadd.f32 %v878, %v881
  %vm883 = vweird.f32 %v862
  %vm884 = vweird.f32 %v878
  %vm885 = vmor %vm883, %vm884
  %v886 = vsel %vm885, %v878, %v882
  %v887 = vand.u32 2147483647, %v862
  %vm888 = vcmp.eq.f32.partialorder %v887, 8.507059e+37
  %v889 = vand.u32 %v862, 2147483648
  %v890 = vor.u32 1.1754944e-38, %v889
  %v891 = vsel %vm888, %v890, %v886
  %v892 = vmul.f32 1.0, %v891
  %v893 = vmul.f32 %v853, %v877
  %v894 = vmul.f32 %v854, %v892
  %s895 = scalar_lea.vmem %s3, 16
  %896 = vst [vmem:[%s895] sm:$0xff] %v893
  %897 = vst [vmem:[%s895 + $0x8] sm:$0xff] %v894
  // Predicated region
  $region14: #{module_with_activation.1} parent=0 // pred_check
    _
  $region15: #{module_with_activation.1} parent=0 // pred_check_branch
    %899 = sbr.rel (0) target = $region17
  $region16: #{module_with_activation.1} parent=0 // pred_region
    _
  $region17: #{module_with_activation.1} parent=0 // pred_fallthru
    _
  // Predicated region
  $region18: #{module_with_activation.1} parent=0 // pred_check
    _
  $region19: #{module_with_activation.1} parent=0 // pred_check_branch
    %901 = sbr.rel (0) target = $region21
  $region20: #{module_with_activation.1} parent=0 // pred_region
    _
  $region21: #{module_with_activation.1} parent=0 // pred_fallthru
    _

</llo_original>
